<compile_context>
chip_gen: v7x
topology: tpu7x:2x2x1
jax: 0.10.0
libtpu: 0.0.40
codegen_flags: <defaults>
</compile_context>

<pallas_src>
import functools

import jax
import jax.numpy as jnp
import numpy as np
from jax.experimental import pallas as pl
from jax.experimental.pallas import tpu as pltpu


def _round_up(n, m):
    return ((n + m - 1) // m) * m


# ---------------------------------------------------------------------------
# Stage 1: h = relu(adj @ xw1), row-block tiled over adj rows.
# ---------------------------------------------------------------------------
def base_gcn_kernel(adj_ref, xw1_ref, h_ref):
    h_ref[...] = jnp.maximum(
        jnp.dot(adj_ref[...], xw1_ref[...], preferred_element_type=jnp.float32),
        0.0,
    )


# ---------------------------------------------------------------------------
# Stage 2: per row block i
#   m      = adj_i @ h                       (tm, H)   -- reassociated matmul
#   a_lin  = m @ (W2 Wp^T) + bp              (tm, Np)
#   s_i    = 0.5 * (sf_i sf^T + scf_i scf^T) (tm, Np)  -- rank-1 via broadcast
#   out_i  = sigmoid(a_lin + s_i)
# ---------------------------------------------------------------------------
def cfgt_pred_kernel(adj_ref, h_ref, w2wp_ref, bp_ref,
                     sf_col_ref, scf_col_ref, sf_row_ref, scf_row_ref, out_ref):
    m = jnp.dot(adj_ref[...], h_ref[...], preferred_element_type=jnp.float32)
    a_lin = jnp.dot(m, w2wp_ref[...], preferred_element_type=jnp.float32) + bp_ref[...]
    s_match = (sf_col_ref[...] * sf_row_ref[...]
               + scf_col_ref[...] * scf_row_ref[...]) * 0.5
    out_ref[...] = jax.nn.sigmoid(a_lin + s_match)


@functools.partial(jax.jit, static_argnums=(1,))
def cfgt_forward(X, sen_idx, params):
    N, _ = X.shape
    H = params["w1"].shape[1]
    Np = _round_up(N, 128)                      # lane-dense output, full MXU lanes
    pad = Np - N
    # Row-block tile: 256 when it divides Np (fits v7x 64 MiB VMEM budget),
    # else 128.  Larger tiles (512) would need a raised vmem limit on v5e/v6e.
    tm = 256 if Np % 256 == 0 else 128
    n_blocks = Np // tm

    # --- Glue matching the PyTorch forward(): extract S, zero sensitive col.
    S = X[:, sen_idx].reshape(N, 1)
    X_ns = X.at[:, sen_idx].set(0.0)

    # sf = nn.Linear(1, 1) affine on S and (1 - S): done in the wrapper.
    w = params["sf_w"][0, 0]
    b = params["sf_b"][0]
    sf = w * S + b                               # (N, 1)
    scf = w * (1.0 - S) + b                      # (N, 1)

    # Tiny matmul (K=16, N=32) left to XLA; also the gcn_mean/pred_a fold.
    xw1 = X_ns @ params["w1"]                    # (N, H)
    w2wp = params["w2"] @ params["wp_t"]         # (H, N)

    # --- Zero-pad every N-sized dimension up to Np.
    adj_p = jnp.pad(params["adj"], ((0, pad), (0, pad)))
    xw1_p = jnp.pad(xw1, ((0, pad), (0, 0)))
    w2wp_p = jnp.pad(w2wp, ((0, 0), (0, pad)))
    bp_p = jnp.pad(params["bp"].reshape(1, N), ((0, 0), (0, pad)))
    sf_col = jnp.pad(sf, ((0, pad), (0, 0)))
    scf_col = jnp.pad(scf, ((0, pad), (0, 0)))
    sf_row = sf_col.reshape(1, Np)
    scf_row = scf_col.reshape(1, Np)

    # VMEM budget: double-buffered adj + out blocks plus small residents.
    vmem_bytes = 4 * (4 * tm * Np) + 4 * (4 * Np * H + 8 * Np) + (2 << 20)
    vmem_limit = int(min(max(vmem_bytes, 16 << 20), 64 << 20))
    cparams = pltpu.CompilerParams(
        dimension_semantics=("parallel",),
        vmem_limit_bytes=vmem_limit,
    )

    # --- Stage 1: h = relu(adj @ xw1), streamed over adj row blocks.
    h_p = pl.pallas_call(
        base_gcn_kernel,
        out_shape=jax.ShapeDtypeStruct((Np, H), jnp.float32),
        grid=(n_blocks,),
        in_specs=[
            pl.BlockSpec((tm, Np), lambda i: (i, 0)),   # adj row block
            pl.BlockSpec((Np, H), lambda i: (0, 0)),    # xw1 resident
        ],
        out_specs=pl.BlockSpec((tm, H), lambda i: (i, 0)),
        compiler_params=cparams,
    )(adj_p, xw1_p)

    # --- Stage 2: streamed logits + s_match + sigmoid, never materializing
    #     the (Np, Np) logits in HBM separately from the output.
    out_p = pl.pallas_call(
        cfgt_pred_kernel,
        out_shape=jax.ShapeDtypeStruct((Np, Np), jnp.float32),
        grid=(n_blocks,),
        in_specs=[
            pl.BlockSpec((tm, Np), lambda i: (i, 0)),   # adj row block (streamed)
            pl.BlockSpec((Np, H), lambda i: (0, 0)),    # h resident
            pl.BlockSpec((H, Np), lambda i: (0, 0)),    # folded W2 Wp^T resident
            pl.BlockSpec((1, Np), lambda i: (0, 0)),    # pred_a bias resident
            pl.BlockSpec((tm, 1), lambda i: (i, 0)),    # sf row-slice
            pl.BlockSpec((tm, 1), lambda i: (i, 0)),    # scf row-slice
            pl.BlockSpec((1, Np), lambda i: (0, 0)),    # sf^T resident
            pl.BlockSpec((1, Np), lambda i: (0, 0)),    # scf^T resident
        ],
        out_specs=pl.BlockSpec((tm, Np), lambda i: (i, 0)),
        compiler_params=cparams,
    )(adj_p, h_p, w2wp_p, bp_p, sf_col, scf_col, sf_row, scf_row)

    return out_p[:N, :N]


def cfgt_ref(X, sen_idx, params):
    # Pure-JAX reference mirroring the PyTorch module exactly (no folding).
    N, _ = X.shape
    S = X[:, sen_idx].reshape(N, 1)
    X_ns = X.at[:, sen_idx].set(0.0)
    h = jax.nn.relu(params["adj"] @ (X_ns @ params["w1"]))
    z = params["adj"] @ (h @ params["w2"])
    a_lin = z @ params["wp_t"] + params["bp"].reshape(1, N)
    sf = S * params["sf_w"][0, 0] + params["sf_b"][0]
    scf = (1.0 - S) * params["sf_w"][0, 0] + params["sf_b"][0]
    s_match = (sf @ sf.T + scf @ scf.T) / 2.0
    return jax.nn.sigmoid(a_lin + s_match)


def glorot(key, in_dim, out_dim):
    r = np.sqrt(6.0 / (in_dim + out_dim))
    return jax.random.uniform(key, (in_dim, out_dim), jnp.float32, -r, r)


def make_params(key, n_nodes, input_dim, h_dim):
    ks = jax.random.split(key, 8)
    # Deterministic synthetic adjacency (dense stand-in for the sparse adj).
    adj = (jax.random.uniform(ks[0], (n_nodes, n_nodes)) > 0.7).astype(jnp.float32)
    adj = jnp.maximum(adj, adj.T)  # symmetric
    w1 = glorot(ks[1], input_dim, h_dim)
    w2 = glorot(ks[2], h_dim, h_dim)
    # pred_a = nn.Linear(h_dim, n_nodes): weight (n_nodes, h_dim), bias (n_nodes,)
    lim_p = 1.0 / np.sqrt(h_dim)
    wp = jax.random.uniform(ks[3], (n_nodes, h_dim), jnp.float32, -lim_p, lim_p)
    bp = jax.random.uniform(ks[4], (n_nodes,), jnp.float32, -lim_p, lim_p)
    # sf = nn.Linear(1, 1)
    sf_w = jax.random.uniform(ks[5], (1, 1), jnp.float32, -1.0, 1.0)
    sf_b = jax.random.uniform(ks[6], (1,), jnp.float32, -1.0, 1.0)
    return {
        "adj": adj,
        "w1": w1,
        "w2": w2,
        "wp_t": wp.T,   # pre-transposed to (h_dim, n_nodes)
        "bp": bp,
        "sf_w": sf_w,
        "sf_b": sf_b,
    }


if __name__ == "__main__":
    N, D_IN, H = 8, 16, 32
    sen_idx = 3

    key = jax.random.PRNGKey(0)
    k_x, k_p = jax.random.split(key)
    X = jax.random.uniform(k_x, (N, D_IN), jnp.float32)
    params = make_params(k_p, N, D_IN, H)

    A_pred = cfgt_forward(X, sen_idx, params)
    A_pred = jax.block_until_ready(A_pred)

    A_ref = cfgt_ref(X, sen_idx, params)
    np.testing.assert_allclose(np.asarray(A_pred), np.asarray(A_ref),
                               rtol=1e-5, atol=1e-5)

    print("KERNEL_OK")
</pallas_src>

<mosaic_0001>
module attributes {stable_mosaic.version = 11 : i64} {
  func.func @cfgt_pred_kernel(%arg0: i32, %arg1: memref<128x128xf32, #tpu.memory_space<vmem>>, %arg2: memref<128x32xf32, #tpu.memory_space<vmem>>, %arg3: memref<32x128xf32, #tpu.memory_space<vmem>>, %arg4: memref<1x128xf32, #tpu.memory_space<vmem>>, %arg5: memref<128x1xf32, #tpu.memory_space<vmem>>, %arg6: memref<128x1xf32, #tpu.memory_space<vmem>>, %arg7: memref<1x128xf32, #tpu.memory_space<vmem>>, %arg8: memref<1x128xf32, #tpu.memory_space<vmem>>, %arg9: memref<128x128xf32, #tpu.memory_space<vmem>>) attributes {dimension_semantics = [#tpu.dimension_semantics<parallel>], iteration_bounds = array<i64: 1>, scalar_prefetch = 0 : i64, scratch_operands = 0 : i64, tpu.core_type = #tpu.core_type<tc>, window_params = [{transform_indices = @transform_0, window_bounds = array<i64: 128, 128>}, {pipeline_mode = #tpu.pipeline_mode<synchronous>, transform_indices = @transform_1, window_bounds = array<i64: 128, 32>}, {pipeline_mode = #tpu.pipeline_mode<synchronous>, transform_indices = @transform_2, window_bounds = array<i64: 32, 128>}, {pipeline_mode = #tpu.pipeline_mode<synchronous>, transform_indices = @transform_3, window_bounds = array<i64: 1, 128>}, {transform_indices = @transform_4, window_bounds = array<i64: 128, 1>}, {transform_indices = @transform_5, window_bounds = array<i64: 128, 1>}, {pipeline_mode = #tpu.pipeline_mode<synchronous>, transform_indices = @transform_6, window_bounds = array<i64: 1, 128>}, {pipeline_mode = #tpu.pipeline_mode<synchronous>, transform_indices = @transform_7, window_bounds = array<i64: 1, 128>}, {transform_indices = @transform_8, window_bounds = array<i64: 128, 128>}]} {
    %c0 = arith.constant 0 : index
    %c0_0 = arith.constant 0 : index
    %0 = vector.load %arg1[%c0, %c0_0] : memref<128x128xf32, #tpu.memory_space<vmem>>, vector<128x128xf32>
    %c0_1 = arith.constant 0 : index
    %c0_2 = arith.constant 0 : index
    %1 = vector.load %arg2[%c0_1, %c0_2] : memref<128x32xf32, #tpu.memory_space<vmem>>, vector<128x32xf32>
    %cst = arith.constant dense<0.000000e+00> : vector<128x32xf32>
    %2 = tpu.matmul %0, %1, %cst {dimension_numbers = #tpu.dot_dimension_numbers<[1], [0], [0], [1], [0, 0, 1, 1], [], []>} : vector<128x128xf32>, vector<128x32xf32>, vector<128x32xf32> -> vector<128x32xf32>
    %c0_3 = arith.constant 0 : index
    %c0_4 = arith.constant 0 : index
    %3 = vector.load %arg3[%c0_3, %c0_4] : memref<32x128xf32, #tpu.memory_space<vmem>>, vector<32x128xf32>
    %cst_5 = arith.constant dense<0.000000e+00> : vector<128x128xf32>
    %4 = tpu.matmul %2, %3, %cst_5 {dimension_numbers = #tpu.dot_dimension_numbers<[1], [0], [0], [1], [0, 0, 1, 1], [], []>} : vector<128x32xf32>, vector<32x128xf32>, vector<128x128xf32> -> vector<128x128xf32>
    %c0_6 = arith.constant 0 : index
    %c0_7 = arith.constant 0 : index
    %5 = vector.load %arg4[%c0_6, %c0_7] : memref<1x128xf32, #tpu.memory_space<vmem>>, vector<1x128xf32>
    %6 = vector.broadcast %5 : vector<1x128xf32> to vector<128x128xf32>
    %7 = arith.addf %4, %6 : vector<128x128xf32>
    %c0_8 = arith.constant 0 : index
    %c0_9 = arith.constant 0 : index
    %8 = vector.load %arg5[%c0_8, %c0_9] : memref<128x1xf32, #tpu.memory_space<vmem>>, vector<128x1xf32>
    %c0_10 = arith.constant 0 : index
    %c0_11 = arith.constant 0 : index
    %9 = vector.load %arg7[%c0_10, %c0_11] : memref<1x128xf32, #tpu.memory_space<vmem>>, vector<1x128xf32>
    %10 = vector.broadcast %8 : vector<128x1xf32> to vector<128x128xf32>
    %11 = vector.broadcast %9 : vector<1x128xf32> to vector<128x128xf32>
    %12 = arith.mulf %10, %11 : vector<128x128xf32>
    %c0_12 = arith.constant 0 : index
    %c0_13 = arith.constant 0 : index
    %13 = vector.load %arg6[%c0_12, %c0_13] : memref<128x1xf32, #tpu.memory_space<vmem>>, vector<128x1xf32>
    %c0_14 = arith.constant 0 : index
    %c0_15 = arith.constant 0 : index
    %14 = vector.load %arg8[%c0_14, %c0_15] : memref<1x128xf32, #tpu.memory_space<vmem>>, vector<1x128xf32>
    %15 = vector.broadcast %13 : vector<128x1xf32> to vector<128x128xf32>
    %16 = vector.broadcast %14 : vector<1x128xf32> to vector<128x128xf32>
    %17 = arith.mulf %15, %16 : vector<128x128xf32>
    %18 = arith.addf %12, %17 : vector<128x128xf32>
    %cst_16 = arith.constant 5.000000e-01 : f32
    %19 = vector.broadcast %cst_16 : f32 to vector<128x128xf32>
    %20 = arith.mulf %18, %19 : vector<128x128xf32>
    %21 = arith.addf %7, %20 : vector<128x128xf32>
    %22 = arith.negf %21 : vector<128x128xf32>
    %23 = math.exp %22 : vector<128x128xf32>
    %cst_17 = arith.constant 1.000000e+00 : f32
    %24 = vector.broadcast %cst_17 : f32 to vector<128x128xf32>
    %25 = arith.addf %24, %23 : vector<128x128xf32>
    %26 = arith.divf %24, %25 : vector<128x128xf32>
    %c0_18 = arith.constant 0 : index
    %c0_19 = arith.constant 0 : index
    %27 = vector.load %arg9[%c0_18, %c0_19] : memref<128x128xf32, #tpu.memory_space<vmem>>, vector<128x128xf32>
    tpu.vector_store %arg9[%c0_18, %c0_19], %26 {strides = array<i32>} : memref<128x128xf32, #tpu.memory_space<vmem>>, vector<128x128xf32>,
    return
  }
  func.func @transform_0(%arg0: i32) -> (i32, i32) {
    %c0_i32 = arith.constant 0 : i32
    %c0_i32_0 = arith.constant 0 : i32
    return %arg0, %c0_i32 : i32, i32
  }
  func.func @transform_1(%arg0: i32) -> (i32, i32) {
    %c0_i32 = arith.constant 0 : i32
    %c0_i32_0 = arith.constant 0 : i32
    %c0_i32_1 = arith.constant 0 : i32
    return %c0_i32, %c0_i32_0 : i32, i32
  }
  func.func @transform_2(%arg0: i32) -> (i32, i32) {
    %c0_i32 = arith.constant 0 : i32
    %c0_i32_0 = arith.constant 0 : i32
    %c0_i32_1 = arith.constant 0 : i32
    return %c0_i32, %c0_i32_0 : i32, i32
  }
  func.func @transform_3(%arg0: i32) -> (i32, i32) {
    %c0_i32 = arith.constant 0 : i32
    %c0_i32_0 = arith.constant 0 : i32
    %c0_i32_1 = arith.constant 0 : i32
    return %c0_i32, %c0_i32_0 : i32, i32
  }
  func.func @transform_4(%arg0: i32) -> (i32, i32) {
    %c0_i32 = arith.constant 0 : i32
    %c0_i32_0 = arith.constant 0 : i32
    return %arg0, %c0_i32 : i32, i32
  }
  func.func @transform_5(%arg0: i32) -> (i32, i32) {
    %c0_i32 = arith.constant 0 : i32
    %c0_i32_0 = arith.constant 0 : i32
    return %arg0, %c0_i32 : i32, i32
  }
  func.func @transform_6(%arg0: i32) -> (i32, i32) {
    %c0_i32 = arith.constant 0 : i32
    %c0_i32_0 = arith.constant 0 : i32
    %c0_i32_1 = arith.constant 0 : i32
    return %c0_i32, %c0_i32_0 : i32, i32
  }
  func.func @transform_7(%arg0: i32) -> (i32, i32) {
    %c0_i32 = arith.constant 0 : i32
    %c0_i32_0 = arith.constant 0 : i32
    %c0_i32_1 = arith.constant 0 : i32
    return %c0_i32, %c0_i32_0 : i32, i32
  }
  func.func @transform_8(%arg0: i32) -> (i32, i32) {
    %c0_i32 = arith.constant 0 : i32
    %c0_i32_0 = arith.constant 0 : i32
    return %arg0, %c0_i32 : i32, i32
  }
}

module attributes {stable_mosaic.version = 11 : i64} {
  func.func @base_gcn_kernel(%arg0: i32, %arg1: memref<128x128xf32, #tpu.memory_space<vmem>>, %arg2: memref<128x32xf32, #tpu.memory_space<vmem>>, %arg3: memref<128x32xf32, #tpu.memory_space<vmem>>) attributes {dimension_semantics = [#tpu.dimension_semantics<parallel>], iteration_bounds = array<i64: 1>, scalar_prefetch = 0 : i64, scratch_operands = 0 : i64, tpu.core_type = #tpu.core_type<tc>, window_params = [{transform_indices = @transform_0, window_bounds = array<i64: 128, 128>}, {pipeline_mode = #tpu.pipeline_mode<synchronous>, transform_indices = @transform_1, window_bounds = array<i64: 128, 32>}, {transform_indices = @transform_2, window_bounds = array<i64: 128, 32>}]} {
    %c0 = arith.constant 0 : index
    %c0_0 = arith.constant 0 : index
    %0 = vector.load %arg1[%c0, %c0_0] : memref<128x128xf32, #tpu.memory_space<vmem>>, vector<128x128xf32>
    %c0_1 = arith.constant 0 : index
    %c0_2 = arith.constant 0 : index
    %1 = vector.load %arg2[%c0_1, %c0_2] : memref<128x32xf32, #tpu.memory_space<vmem>>, vector<128x32xf32>
    %cst = arith.constant dense<0.000000e+00> : vector<128x32xf32>
    %2 = tpu.matmul %0, %1, %cst {dimension_numbers = #tpu.dot_dimension_numbers<[1], [0], [0], [1], [0, 0, 1, 1], [], []>} : vector<128x128xf32>, vector<128x32xf32>, vector<128x32xf32> -> vector<128x32xf32>
    %cst_3 = arith.constant 0.000000e+00 : f32
    %3 = vector.broadcast %cst_3 : f32 to vector<128x32xf32>
    %4 = arith.maximumf %2, %3 : vector<128x32xf32>
    %c0_4 = arith.constant 0 : index
    %c0_5 = arith.constant 0 : index
    %5 = vector.load %arg3[%c0_4, %c0_5] : memref<128x32xf32, #tpu.memory_space<vmem>>, vector<128x32xf32>
    tpu.vector_store %arg3[%c0_4, %c0_5], %4 {strides = array<i32>} : memref<128x32xf32, #tpu.memory_space<vmem>>, vector<128x32xf32>,
    return
  }
  func.func @transform_0(%arg0: i32) -> (i32, i32) {
    %c0_i32 = arith.constant 0 : i32
    %c0_i32_0 = arith.constant 0 : i32
    return %arg0, %c0_i32 : i32, i32
  }
  func.func @transform_1(%arg0: i32) -> (i32, i32) {
    %c0_i32 = arith.constant 0 : i32
    %c0_i32_0 = arith.constant 0 : i32
    %c0_i32_1 = arith.constant 0 : i32
    return %c0_i32, %c0_i32_0 : i32, i32
  }
  func.func @transform_2(%arg0: i32) -> (i32, i32) {
    %c0_i32 = arith.constant 0 : i32
    %c0_i32_0 = arith.constant 0 : i32
    return %arg0, %c0_i32 : i32, i32
  }
}

</mosaic_0001>

<llo_original>
// kernel: cfgt_forward.2
$region0: #{cfgt_forward.2}
  #allocation0 [shape = 'u32[]', space=smem, size = 0x4, offset = 0x4, fixed_abs, tag = 'smem constant byte address 0x4 - core index']
  #allocation1 [shape = 'u32[144,128]{1,0:T(1,128)}', space=vmem, size = 0x12000, scoped, tag = 'internal scratch']
  %s0 = inlined_call_operand.vmem [shape: f32[128,128], index: 0, kind: input, shape index: {}]
  %s1 = inlined_call_operand.vmem [shape: f32[128,32], index: 1, kind: input, shape index: {}]
  %s2 = inlined_call_operand.vmem [shape: f32[128,32], index: 2, kind: output, shape index: {}]
  %s3 = sld [smem:[#allocation0]]
  $region18: #{cfgt_forward.2} parent=0
    _
  %s5 = ssub.s32 1, %s3
  %s6 = scalar_select 0, %s5, %s3
  // Predicated region
  $region2: #{cfgt_forward.2} parent=0 // pred_check
    _
  $region3: #{cfgt_forward.2} parent=0 // pred_check_branch
    %8 = sbr.rel (0) target = $region5
  $region4: #{cfgt_forward.2} parent=0 // pred_region
    _
  $region5: #{cfgt_forward.2} parent=0 // pred_fallthru
    _
  // Predicated region
  $region6: #{cfgt_forward.2} parent=0 // pred_check
    _
  $region7: #{cfgt_forward.2} parent=0 // pred_check_branch
    %10 = sbr.rel (0) target = $region9
  $region8: #{cfgt_forward.2} parent=0 // pred_region
    _
  $region9: #{cfgt_forward.2} parent=0 // pred_fallthru
    _
  %v11 = vld [vmem:[%s0] sm:$0xff]
  %v12 = vld [vmem:[%s0 + $0x8] sm:$0xff]
  %v13 = vld [vmem:[%s0 + $0x10] sm:$0xff]
  %v14 = vld [vmem:[%s0 + $0x18] sm:$0xff]
  %v15 = vld [vmem:[%s0 + $0x20] sm:$0xff]
  %v16 = vld [vmem:[%s0 + $0x28] sm:$0xff]
  %v17 = vld [vmem:[%s0 + $0x30] sm:$0xff]
  %v18 = vld [vmem:[%s0 + $0x38] sm:$0xff]
  %v19 = vld [vmem:[%s0 + $0x40] sm:$0xff]
  %v20 = vld [vmem:[%s0 + $0x48] sm:$0xff]
  %v21 = vld [vmem:[%s0 + $0x50] sm:$0xff]
  %v22 = vld [vmem:[%s0 + $0x58] sm:$0xff]
  %v23 = vld [vmem:[%s0 + $0x60] sm:$0xff]
  %v24 = vld [vmem:[%s0 + $0x68] sm:$0xff]
  %v25 = vld [vmem:[%s0 + $0x70] sm:$0xff]
  %v26 = vld [vmem:[%s0 + $0x78] sm:$0xff]
  %v27 = vld [vmem:[%s1] sm:$0xff]
  %v28 = vld [vmem:[%s1 + $0x8] sm:$0xff]
  %v29 = vld [vmem:[%s1 + $0x10] sm:$0xff]
  %v30 = vld [vmem:[%s1 + $0x18] sm:$0xff]
  %v31 = vld [vmem:[%s1 + $0x20] sm:$0xff]
  %v32 = vld [vmem:[%s1 + $0x28] sm:$0xff]
  %v33 = vld [vmem:[%s1 + $0x30] sm:$0xff]
  %v34 = vld [vmem:[%s1 + $0x38] sm:$0xff]
  %v35 = vld [vmem:[%s1 + $0x40] sm:$0xff]
  %v36 = vld [vmem:[%s1 + $0x48] sm:$0xff]
  %v37 = vld [vmem:[%s1 + $0x50] sm:$0xff]
  %v38 = vld [vmem:[%s1 + $0x58] sm:$0xff]
  %v39 = vld [vmem:[%s1 + $0x60] sm:$0xff]
  %v40 = vld [vmem:[%s1 + $0x68] sm:$0xff]
  %v41 = vld [vmem:[%s1 + $0x70] sm:$0xff]
  %v42 = vld [vmem:[%s1 + $0x78] sm:$0xff]
  %43 = vmatprep.subr.mxu0 0.0
  %44 = vmatpush1.msra.mxu0 %v27
  %45 = vmatprep.subr.mxu0 0.0
  %46 = vmatpush1.msra.mxu0 %v28
  %47 = vmatprep.subr.mxu0 0.0
  %48 = vmatpush1.msra.mxu0 %v29
  %49 = vmatprep.subr.mxu0 0.0
  %50 = vmatpush1.msra.mxu0 %v30
  %51 = vmatprep.subr.mxu0 0.0
  %52 = vmatpush1.msra.mxu0 %v31
  %53 = vmatprep.subr.mxu0 0.0
  %54 = vmatpush1.msra.mxu0 %v32
  %55 = vmatprep.subr.mxu0 0.0
  %56 = vmatpush1.msra.mxu0 %v33
  %57 = vmatprep.subr.mxu0 0.0
  %58 = vmatpush1.msra.mxu0 %v34
  %59 = vmatprep.subr.mxu0 0.0
  %60 = vmatpush1.msra.mxu0 %v35
  %61 = vmatprep.subr.mxu0 0.0
  %62 = vmatpush1.msra.mxu0 %v36
  %63 = vmatprep.subr.mxu0 0.0
  %64 = vmatpush1.msra.mxu0 %v37
  %65 = vmatprep.subr.mxu0 0.0
  %66 = vmatpush1.msra.mxu0 %v38
  %67 = vmatprep.subr.mxu0 0.0
  %68 = vmatpush1.msra.mxu0 %v39
  %69 = vmatprep.subr.mxu0 0.0
  %70 = vmatpush1.msra.mxu0 %v40
  %71 = vmatprep.subr.mxu0 0.0
  %72 = vmatpush1.msra.mxu0 %v41
  %73 = vmatprep.subr.mxu0 0.0
  %74 = vmatpush1.msra.mxu0 %v42
  %75 = vmatprep.subr.mxu0 0.0
  %76 = vmatpush1.msra.mxu0 0.0
  %77 = vmatprep.subr.mxu0 0.0
  %78 = vmatpush1.msra.mxu0 0.0
  %79 = vmatprep.subr.mxu0 0.0
  %80 = vmatpush1.msra.mxu0 0.0
  %81 = vmatprep.subr.mxu0 0.0
  %82 = vmatpush1.msra.mxu0 0.0
  %83 = vmatprep.subr.mxu0 0.0
  %84 = vmatpush1.msra.mxu0 0.0
  %85 = vmatprep.subr.mxu0 0.0
  %86 = vmatpush1.msra.mxu0 0.0
  %87 = vmatprep.subr.mxu0 0.0
  %88 = vmatpush1.msra.mxu0 0.0
  %89 = vmatprep.subr.mxu0 0.0
  %90 = vmatpush1.msra.mxu0 0.0
  %91 = vmatprep.subr.mxu0 0.0
  %92 = vmatpush1.msra.mxu0 0.0
  %93 = vmatprep.subr.mxu0 0.0
  %94 = vmatpush1.msra.mxu0 0.0
  %95 = vmatprep.subr.mxu0 0.0
  %96 = vmatpush1.msra.mxu0 0.0
  %97 = vmatprep.subr.mxu0 0.0
  %98 = vmatpush1.msra.mxu0 0.0
  %99 = vmatprep.subr.mxu0 0.0
  %100 = vmatpush1.msra.mxu0 0.0
  %101 = vmatprep.subr.mxu0 0.0
  %102 = vmatpush1.msra.mxu0 0.0
  %103 = vmatprep.subr.mxu0 0.0
  %104 = vmatpush1.msra.mxu0 0.0
  %105 = vmatprep.subr.mxu0 0.0
  %106 = vmatpush1.msra.mxu0 0.0
  %107 = vmatprep.mubr.f32.mxu0 0.0
  %108 = vmatmul.mubr.f32.gmra.mrb[0].mxu0 %v11
  %v109 = vpop.f32.mrb[0].mxu0
  %v110 = vadd.f32 0.0, %v109
  %v111 = vpop.f32.mrb[0].mxu0
  %112 = vmatprep.mubr.f32.mxu0 0.0
  %113 = vmatmul.mubr.f32.gmra.mrb[0].mxu0 %v12
  %v114 = vpop.f32.mrb[0].mxu0
  %v115 = vadd.f32 0.0, %v114
  %v116 = vpop.f32.mrb[0].mxu0
  %117 = vmatprep.mubr.f32.mxu0 0.0
  %118 = vmatmul.mubr.f32.gmra.mrb[0].mxu0 %v13
  %v119 = vpop.f32.mrb[0].mxu0
  %v120 = vadd.f32 0.0, %v119
  %v121 = vpop.f32.mrb[0].mxu0
  %122 = vmatprep.mubr.f32.mxu0 0.0
  %123 = vmatmul.mubr.f32.gmra.mrb[0].mxu0 %v14
  %v124 = vpop.f32.mrb[0].mxu0
  %v125 = vadd.f32 0.0, %v124
  %v126 = vpop.f32.mrb[0].mxu0
  %127 = vmatprep.mubr.f32.mxu0 0.0
  %128 = vmatmul.mubr.f32.gmra.mrb[0].mxu0 %v15
  %v129 = vpop.f32.mrb[0].mxu0
  %v130 = vadd.f32 0.0, %v129
  %v131 = vpop.f32.mrb[0].mxu0
  %132 = vmatprep.mubr.f32.mxu0 0.0
  %133 = vmatmul.mubr.f32.gmra.mrb[0].mxu0 %v16
  %v134 = vpop.f32.mrb[0].mxu0
  %v135 = vadd.f32 0.0, %v134
  %v136 = vpop.f32.mrb[0].mxu0
  %137 = vmatprep.mubr.f32.mxu0 0.0
  %138 = vmatmul.mubr.f32.gmra.mrb[0].mxu0 %v17
  %v139 = vpop.f32.mrb[0].mxu0
  %v140 = vadd.f32 0.0, %v139
  %v141 = vpop.f32.mrb[0].mxu0
  %142 = vmatprep.mubr.f32.mxu0 0.0
  %143 = vmatmul.mubr.f32.gmra.mrb[0].mxu0 %v18
  %v144 = vpop.f32.mrb[0].mxu0
  %v145 = vadd.f32 0.0, %v144
  %v146 = vpop.f32.mrb[0].mxu0
  %147 = vmatprep.mubr.f32.mxu0 0.0
  %148 = vmatmul.mubr.f32.gmra.mrb[0].mxu0 %v19
  %v149 = vpop.f32.mrb[0].mxu0
  %v150 = vadd.f32 0.0, %v149
  %v151 = vpop.f32.mrb[0].mxu0
  %152 = vmatprep.mubr.f32.mxu0 0.0
  %153 = vmatmul.mubr.f32.gmra.mrb[0].mxu0 %v20
  %v154 = vpop.f32.mrb[0].mxu0
  %v155 = vadd.f32 0.0, %v154
  %v156 = vpop.f32.mrb[0].mxu0
  %157 = vmatprep.mubr.f32.mxu0 0.0
  %158 = vmatmul.mubr.f32.gmra.mrb[0].mxu0 %v21
  %v159 = vpop.f32.mrb[0].mxu0
  %v160 = vadd.f32 0.0, %v159
  %v161 = vpop.f32.mrb[0].mxu0
  %162 = vmatprep.mubr.f32.mxu0 0.0
  %163 = vmatmul.mubr.f32.gmra.mrb[0].mxu0 %v22
  %v164 = vpop.f32.mrb[0].mxu0
  %v165 = vadd.f32 0.0, %v164
  %v166 = vpop.f32.mrb[0].mxu0
  %167 = vmatprep.mubr.f32.mxu0 0.0
  %168 = vmatmul.mubr.f32.gmra.mrb[0].mxu0 %v23
  %v169 = vpop.f32.mrb[0].mxu0
  %v170 = vadd.f32 0.0, %v169
  %v171 = vpop.f32.mrb[0].mxu0
  %172 = vmatprep.mubr.f32.mxu0 0.0
  %173 = vmatmul.mubr.f32.gmra.mrb[0].mxu0 %v24
  %v174 = vpop.f32.mrb[0].mxu0
  %v175 = vadd.f32 0.0, %v174
  %v176 = vpop.f32.mrb[0].mxu0
  %177 = vmatprep.mubr.f32.mxu0 0.0
  %178 = vmatmul.mubr.f32.gmra.mrb[0].mxu0 %v25
  %v179 = vpop.f32.mrb[0].mxu0
  %v180 = vadd.f32 0.0, %v179
  %v181 = vpop.f32.mrb[0].mxu0
  %182 = vmatprep.mubr.f32.mxu0 0.0
  %183 = vmatmul.mubr.f32.gmra.mrb[0].mxu0 %v26
  %v184 = vpop.f32.mrb[0].mxu0
  %v185 = vadd.f32 0.0, %v184
  %v186 = vpop.f32.mrb[0].mxu0
  %187 = vdwg.mxu0
  %v188 = vmax.f32 %v110, 0.0
  %v189 = vmax.f32 %v115, 0.0
  %v190 = vmax.f32 %v120, 0.0
  %v191 = vmax.f32 %v125, 0.0
  %v192 = vmax.f32 %v130, 0.0
  %v193 = vmax.f32 %v135, 0.0
  %v194 = vmax.f32 %v140, 0.0
  %v195 = vmax.f32 %v145, 0.0
  %v196 = vmax.f32 %v150, 0.0
  %v197 = vmax.f32 %v155, 0.0
  %v198 = vmax.f32 %v160, 0.0
  %v199 = vmax.f32 %v165, 0.0
  %v200 = vmax.f32 %v170, 0.0
  %v201 = vmax.f32 %v175, 0.0
  %v202 = vmax.f32 %v180, 0.0
  %v203 = vmax.f32 %v185, 0.0
  %vm204 = vcmask 261120
  %205 = vst.msk [vmem:[%s2] sm:$0xff] %vm204, %v188
  %206 = vst.msk [vmem:[%s2 + $0x8] sm:$0xff] %vm204, %v189
  %207 = vst.msk [vmem:[%s2 + $0x10] sm:$0xff] %vm204, %v190
  %208 = vst.msk [vmem:[%s2 + $0x18] sm:$0xff] %vm204, %v191
  %209 = vst.msk [vmem:[%s2 + $0x20] sm:$0xff] %vm204, %v192
  %210 = vst.msk [vmem:[%s2 + $0x28] sm:$0xff] %vm204, %v193
  %211 = vst.msk [vmem:[%s2 + $0x30] sm:$0xff] %vm204, %v194
  %212 = vst.msk [vmem:[%s2 + $0x38] sm:$0xff] %vm204, %v195
  %213 = vst.msk [vmem:[%s2 + $0x40] sm:$0xff] %vm204, %v196
  %214 = vst.msk [vmem:[%s2 + $0x48] sm:$0xff] %vm204, %v197
  %215 = vst.msk [vmem:[%s2 + $0x50] sm:$0xff] %vm204, %v198
  %216 = vst.msk [vmem:[%s2 + $0x58] sm:$0xff] %vm204, %v199
  %217 = vst.msk [vmem:[%s2 + $0x60] sm:$0xff] %vm204, %v200
  %218 = vst.msk [vmem:[%s2 + $0x68] sm:$0xff] %vm204, %v201
  %219 = vst.msk [vmem:[%s2 + $0x70] sm:$0xff] %vm204, %v202
  %220 = vst.msk [vmem:[%s2 + $0x78] sm:$0xff] %vm204, %v203
  // Predicated region
  $region10: #{cfgt_forward.2} parent=0 // pred_check
    _
  $region11: #{cfgt_forward.2} parent=0 // pred_check_branch
    %222 = sbr.rel (0) target = $region13
  $region12: #{cfgt_forward.2} parent=0 // pred_region
    _
  $region13: #{cfgt_forward.2} parent=0 // pred_fallthru
    _
  // Predicated region
  $region14: #{cfgt_forward.2} parent=0 // pred_check
    _
  $region15: #{cfgt_forward.2} parent=0 // pred_check_branch
    %224 = sbr.rel (0) target = $region17
  $region16: #{cfgt_forward.2} parent=0 // pred_region
    _
  $region17: #{cfgt_forward.2} parent=0 // pred_fallthru
    _

// kernel: cfgt_forward.3
$region0: #{cfgt_forward.3}
  #allocation0 [shape = 'u32[]', space=smem, size = 0x4, offset = 0x4, fixed_abs, tag = 'smem constant byte address 0x4 - core index']
  #allocation1 [shape = 'u32[144,128]{1,0:T(1,128)}', space=vmem, size = 0x12000, scoped, tag = 'internal scratch']
  %s0 = inlined_call_operand.vmem [shape: f32[128,128], index: 0, kind: input, shape index: {}]
  %s1 = inlined_call_operand.vmem [shape: f32[128,32], index: 1, kind: input, shape index: {}]
  %s2 = inlined_call_operand.vmem [shape: f32[32,128], index: 2, kind: input, shape index: {}]
  %s3 = inlined_call_operand.vmem [shape: f32[1,128], index: 3, kind: input, shape index: {}]
  %s4 = inlined_call_operand.vmem [shape: f32[128,1], index: 4, kind: input, shape index: {}]
  %s5 = inlined_call_operand.vmem [shape: f32[128,1], index: 5, kind: input, shape index: {}]
  %s6 = inlined_call_operand.vmem [shape: f32[1,128], index: 6, kind: input, shape index: {}]
  %s7 = inlined_call_operand.vmem [shape: f32[1,128], index: 7, kind: input, shape index: {}]
  %s8 = inlined_call_operand.vmem [shape: f32[128,128], index: 8, kind: output, shape index: {}]
  %s9 = sld [smem:[#allocation0]]
  $region42: #{cfgt_forward.3} parent=0
    _
  %s11 = ssub.s32 1, %s9
  %s12 = scalar_select 0, %s11, %s9
  // Predicated region
  $region2: #{cfgt_forward.3} parent=0 // pred_check
    _
  $region3: #{cfgt_forward.3} parent=0 // pred_check_branch
    %14 = sbr.rel (0) target = $region5
  $region4: #{cfgt_forward.3} parent=0 // pred_region
    _
  $region5: #{cfgt_forward.3} parent=0 // pred_fallthru
    _
  // Predicated region
  $region6: #{cfgt_forward.3} parent=0 // pred_check
    _
  $region7: #{cfgt_forward.3} parent=0 // pred_check_branch
    %16 = sbr.rel (0) target = $region9
  $region8: #{cfgt_forward.3} parent=0 // pred_region
    _
  $region9: #{cfgt_forward.3} parent=0 // pred_fallthru
    _
  // Predicated region
  $region10: #{cfgt_forward.3} parent=0 // pred_check
    _
  $region11: #{cfgt_forward.3} parent=0 // pred_check_branch
    %18 = sbr.rel (0) target = $region13
  $region12: #{cfgt_forward.3} parent=0 // pred_region
    _
  $region13: #{cfgt_forward.3} parent=0 // pred_fallthru
    _
  // Predicated region
  $region14: #{cfgt_forward.3} parent=0 // pred_check
    _
  $region15: #{cfgt_forward.3} parent=0 // pred_check_branch
    %20 = sbr.rel (0) target = $region17
  $region16: #{cfgt_forward.3} parent=0 // pred_region
    _
  $region17: #{cfgt_forward.3} parent=0 // pred_fallthru
    _
  // Predicated region
  $region18: #{cfgt_forward.3} parent=0 // pred_check
    _
  $region19: #{cfgt_forward.3} parent=0 // pred_check_branch
    %22 = sbr.rel (0) target = $region21
  $region20: #{cfgt_forward.3} parent=0 // pred_region
    _
  $region21: #{cfgt_forward.3} parent=0 // pred_fallthru
    _
  // Predicated region
  $region22: #{cfgt_forward.3} parent=0 // pred_check
    _
  $region23: #{cfgt_forward.3} parent=0 // pred_check_branch
    %24 = sbr.rel (0) target = $region25
  $region24: #{cfgt_forward.3} parent=0 // pred_region
    _
  $region25: #{cfgt_forward.3} parent=0 // pred_fallthru
    _
  // Predicated region
  $region26: #{cfgt_forward.3} parent=0 // pred_check
    _
  $region27: #{cfgt_forward.3} parent=0 // pred_check_branch
    %26 = sbr.rel (0) target = $region29
  $region28: #{cfgt_forward.3} parent=0 // pred_region
    _
  $region29: #{cfgt_forward.3} parent=0 // pred_fallthru
    _
  // Predicated region
  $region30: #{cfgt_forward.3} parent=0 // pred_check
    _
  $region31: #{cfgt_forward.3} parent=0 // pred_check_branch
    %28 = sbr.rel (0) target = $region33
  $region32: #{cfgt_forward.3} parent=0 // pred_region
    _
  $region33: #{cfgt_forward.3} parent=0 // pred_fallthru
    _
  %v29 = vld [vmem:[%s0] sm:$0xff]
  %v30 = vld [vmem:[%s0 + $0x8] sm:$0xff]
  %v31 = vld [vmem:[%s0 + $0x10] sm:$0xff]
  %v32 = vld [vmem:[%s0 + $0x18] sm:$0xff]
  %v33 = vld [vmem:[%s0 + $0x20] sm:$0xff]
  %v34 = vld [vmem:[%s0 + $0x28] sm:$0xff]
  %v35 = vld [vmem:[%s0 + $0x30] sm:$0xff]
  %v36 = vld [vmem:[%s0 + $0x38] sm:$0xff]
  %v37 = vld [vmem:[%s0 + $0x40] sm:$0xff]
  %v38 = vld [vmem:[%s0 + $0x48] sm:$0xff]
  %v39 = vld [vmem:[%s0 + $0x50] sm:$0xff]
  %v40 = vld [vmem:[%s0 + $0x58] sm:$0xff]
  %v41 = vld [vmem:[%s0 + $0x60] sm:$0xff]
  %v42 = vld [vmem:[%s0 + $0x68] sm:$0xff]
  %v43 = vld [vmem:[%s0 + $0x70] sm:$0xff]
  %v44 = vld [vmem:[%s0 + $0x78] sm:$0xff]
  %v45 = vld [vmem:[%s1] sm:$0xff]
  %v46 = vld [vmem:[%s1 + $0x8] sm:$0xff]
  %v47 = vld [vmem:[%s1 + $0x10] sm:$0xff]
  %v48 = vld [vmem:[%s1 + $0x18] sm:$0xff]
  %v49 = vld [vmem:[%s1 + $0x20] sm:$0xff]
  %v50 = vld [vmem:[%s1 + $0x28] sm:$0xff]
  %v51 = vld [vmem:[%s1 + $0x30] sm:$0xff]
  %v52 = vld [vmem:[%s1 + $0x38] sm:$0xff]
  %v53 = vld [vmem:[%s1 + $0x40] sm:$0xff]
  %v54 = vld [vmem:[%s1 + $0x48] sm:$0xff]
  %v55 = vld [vmem:[%s1 + $0x50] sm:$0xff]
  %v56 = vld [vmem:[%s1 + $0x58] sm:$0xff]
  %v57 = vld [vmem:[%s1 + $0x60] sm:$0xff]
  %v58 = vld [vmem:[%s1 + $0x68] sm:$0xff]
  %v59 = vld [vmem:[%s1 + $0x70] sm:$0xff]
  %v60 = vld [vmem:[%s1 + $0x78] sm:$0xff]
  %61 = vmatprep.subr.mxu0 0.0
  %62 = vmatpush1.msra.mxu0 %v45
  %63 = vmatprep.subr.mxu0 0.0
  %64 = vmatpush1.msra.mxu0 %v46
  %65 = vmatprep.subr.mxu0 0.0
  %66 = vmatpush1.msra.mxu0 %v47
  %67 = vmatprep.subr.mxu0 0.0
  %68 = vmatpush1.msra.mxu0 %v48
  %69 = vmatprep.subr.mxu0 0.0
  %70 = vmatpush1.msra.mxu0 %v49
  %71 = vmatprep.subr.mxu0 0.0
  %72 = vmatpush1.msra.mxu0 %v50
  %73 = vmatprep.subr.mxu0 0.0
  %74 = vmatpush1.msra.mxu0 %v51
  %75 = vmatprep.subr.mxu0 0.0
  %76 = vmatpush1.msra.mxu0 %v52
  %77 = vmatprep.subr.mxu0 0.0
  %78 = vmatpush1.msra.mxu0 %v53
  %79 = vmatprep.subr.mxu0 0.0
  %80 = vmatpush1.msra.mxu0 %v54
  %81 = vmatprep.subr.mxu0 0.0
  %82 = vmatpush1.msra.mxu0 %v55
  %83 = vmatprep.subr.mxu0 0.0
  %84 = vmatpush1.msra.mxu0 %v56
  %85 = vmatprep.subr.mxu0 0.0
  %86 = vmatpush1.msra.mxu0 %v57
  %87 = vmatprep.subr.mxu0 0.0
  %88 = vmatpush1.msra.mxu0 %v58
  %89 = vmatprep.subr.mxu0 0.0
  %90 = vmatpush1.msra.mxu0 %v59
  %91 = vmatprep.subr.mxu0 0.0
  %92 = vmatpush1.msra.mxu0 %v60
  %93 = vmatprep.subr.mxu0 0.0
  %94 = vmatpush1.msra.mxu0 0.0
  %95 = vmatprep.subr.mxu0 0.0
  %96 = vmatpush1.msra.mxu0 0.0
  %97 = vmatprep.subr.mxu0 0.0
  %98 = vmatpush1.msra.mxu0 0.0
  %99 = vmatprep.subr.mxu0 0.0
  %100 = vmatpush1.msra.mxu0 0.0
  %101 = vmatprep.subr.mxu0 0.0
  %102 = vmatpush1.msra.mxu0 0.0
  %103 = vmatprep.subr.mxu0 0.0
  %104 = vmatpush1.msra.mxu0 0.0
  %105 = vmatprep.subr.mxu0 0.0
  %106 = vmatpush1.msra.mxu0 0.0
  %107 = vmatprep.subr.mxu0 0.0
  %108 = vmatpush1.msra.mxu0 0.0
  %109 = vmatprep.subr.mxu0 0.0
  %110 = vmatpush1.msra.mxu0 0.0
  %111 = vmatprep.subr.mxu0 0.0
  %112 = vmatpush1.msra.mxu0 0.0
  %113 = vmatprep.subr.mxu0 0.0
  %114 = vmatpush1.msra.mxu0 0.0
  %115 = vmatprep.subr.mxu0 0.0
  %116 = vmatpush1.msra.mxu0 0.0
  %117 = vmatprep.subr.mxu0 0.0
  %118 = vmatpush1.msra.mxu0 0.0
  %119 = vmatprep.subr.mxu0 0.0
  %120 = vmatpush1.msra.mxu0 0.0
  %121 = vmatprep.subr.mxu0 0.0
  %122 = vmatpush1.msra.mxu0 0.0
  %123 = vmatprep.subr.mxu0 0.0
  %124 = vmatpush1.msra.mxu0 0.0
  %125 = vmatprep.mubr.f32.mxu0 0.0
  %126 = vmatmul.mubr.f32.gmra.mrb[0].mxu0 %v29
  %v127 = vpop.f32.mrb[0].mxu0
  %v128 = vadd.f32 0.0, %v127
  %v129 = vpop.f32.mrb[0].mxu0
  %130 = vmatprep.mubr.f32.mxu0 0.0
  %131 = vmatmul.mubr.f32.gmra.mrb[0].mxu0 %v30
  %v132 = vpop.f32.mrb[0].mxu0
  %v133 = vadd.f32 0.0, %v132
  %v134 = vpop.f32.mrb[0].mxu0
  %135 = vmatprep.mubr.f32.mxu0 0.0
  %136 = vmatmul.mubr.f32.gmra.mrb[0].mxu0 %v31
  %v137 = vpop.f32.mrb[0].mxu0
  %v138 = vadd.f32 0.0, %v137
  %v139 = vpop.f32.mrb[0].mxu0
  %140 = vmatprep.mubr.f32.mxu0 0.0
  %141 = vmatmul.mubr.f32.gmra.mrb[0].mxu0 %v32
  %v142 = vpop.f32.mrb[0].mxu0
  %v143 = vadd.f32 0.0, %v142
  %v144 = vpop.f32.mrb[0].mxu0
  %145 = vmatprep.mubr.f32.mxu0 0.0
  %146 = vmatmul.mubr.f32.gmra.mrb[0].mxu0 %v33
  %v147 = vpop.f32.mrb[0].mxu0
  %v148 = vadd.f32 0.0, %v147
  %v149 = vpop.f32.mrb[0].mxu0
  %150 = vmatprep.mubr.f32.mxu0 0.0
  %151 = vmatmul.mubr.f32.gmra.mrb[0].mxu0 %v34
  %v152 = vpop.f32.mrb[0].mxu0
  %v153 = vadd.f32 0.0, %v152
  %v154 = vpop.f32.mrb[0].mxu0
  %155 = vmatprep.mubr.f32.mxu0 0.0
  %156 = vmatmul.mubr.f32.gmra.mrb[0].mxu0 %v35
  %v157 = vpop.f32.mrb[0].mxu0
  %v158 = vadd.f32 0.0, %v157
  %v159 = vpop.f32.mrb[0].mxu0
  %160 = vmatprep.mubr.f32.mxu0 0.0
  %161 = vmatmul.mubr.f32.gmra.mrb[0].mxu0 %v36
  %v162 = vpop.f32.mrb[0].mxu0
  %v163 = vadd.f32 0.0, %v162
  %v164 = vpop.f32.mrb[0].mxu0
  %165 = vmatprep.mubr.f32.mxu0 0.0
  %166 = vmatmul.mubr.f32.gmra.mrb[0].mxu0 %v37
  %v167 = vpop.f32.mrb[0].mxu0
  %v168 = vadd.f32 0.0, %v167
  %v169 = vpop.f32.mrb[0].mxu0
  %170 = vmatprep.mubr.f32.mxu0 0.0
  %171 = vmatmul.mubr.f32.gmra.mrb[0].mxu0 %v38
  %v172 = vpop.f32.mrb[0].mxu0
  %v173 = vadd.f32 0.0, %v172
  %v174 = vpop.f32.mrb[0].mxu0
  %175 = vmatprep.mubr.f32.mxu0 0.0
  %176 = vmatmul.mubr.f32.gmra.mrb[0].mxu0 %v39
  %v177 = vpop.f32.mrb[0].mxu0
  %v178 = vadd.f32 0.0, %v177
  %v179 = vpop.f32.mrb[0].mxu0
  %180 = vmatprep.mubr.f32.mxu0 0.0
  %181 = vmatmul.mubr.f32.gmra.mrb[0].mxu0 %v40
  %v182 = vpop.f32.mrb[0].mxu0
  %v183 = vadd.f32 0.0, %v182
  %v184 = vpop.f32.mrb[0].mxu0
  %185 = vmatprep.mubr.f32.mxu0 0.0
  %186 = vmatmul.mubr.f32.gmra.mrb[0].mxu0 %v41
  %v187 = vpop.f32.mrb[0].mxu0
  %v188 = vadd.f32 0.0, %v187
  %v189 = vpop.f32.mrb[0].mxu0
  %190 = vmatprep.mubr.f32.mxu0 0.0
  %191 = vmatmul.mubr.f32.gmra.mrb[0].mxu0 %v42
  %v192 = vpop.f32.mrb[0].mxu0
  %v193 = vadd.f32 0.0, %v192
  %v194 = vpop.f32.mrb[0].mxu0
  %195 = vmatprep.mubr.f32.mxu0 0.0
  %196 = vmatmul.mubr.f32.gmra.mrb[0].mxu0 %v43
  %v197 = vpop.f32.mrb[0].mxu0
  %v198 = vadd.f32 0.0, %v197
  %v199 = vpop.f32.mrb[0].mxu0
  %200 = vmatprep.mubr.f32.mxu0 0.0
  %201 = vmatmul.mubr.f32.gmra.mrb[0].mxu0 %v44
  %v202 = vpop.f32.mrb[0].mxu0
  %v203 = vadd.f32 0.0, %v202
  %v204 = vpop.f32.mrb[0].mxu0
  %205 = vdwg.mxu0
  %v206 = vld [vmem:[%s2] sm:$0xff]
  %v207 = vld [vmem:[%s2 + $0x8] sm:$0xff]
  %v208 = vld [vmem:[%s2 + $0x10] sm:$0xff]
  %v209 = vld [vmem:[%s2 + $0x18] sm:$0xff]
  %v210 = vld [vmem:[%s3] sm:$0x1]
  %v212 = vlaneseq
  %v213 = vshrl.u32 %v212, 7
  %v214 = vsub.s32 0, %v213
  %v215 = vrot.slane %v210, %v214
  %vm217 = vcmask 261120
  %v219 = vsel %vm217, %v128, 0
  %v222 = vsel %vm217, %v133, 0
  %v225 = vsel %vm217, %v138, 0
  %v228 = vsel %vm217, %v143, 0
  %v231 = vsel %vm217, %v148, 0
  %v234 = vsel %vm217, %v153, 0
  %v237 = vsel %vm217, %v158, 0
  %v240 = vsel %vm217, %v163, 0
  %v243 = vsel %vm217, %v168, 0
  %v246 = vsel %vm217, %v173, 0
  %v249 = vsel %vm217, %v178, 0
  %v252 = vsel %vm217, %v183, 0
  %v255 = vsel %vm217, %v188, 0
  %v258 = vsel %vm217, %v193, 0
  %v261 = vsel %vm217, %v198, 0
  %v264 = vsel %vm217, %v203, 0
  %266 = vmatprep.subr.mxu0 0.0
  %267 = vmatpush1.msra.mxu0 %v206
  %268 = vmatprep.subr.mxu0 0.0
  %269 = vmatpush1.msra.mxu0 %v207
  %270 = vmatprep.subr.mxu0 0.0
  %271 = vmatpush1.msra.mxu0 %v208
  %272 = vmatprep.subr.mxu0 0.0
  %273 = vmatpush1.msra.mxu0 %v209
  %274 = vmatprep.subr.mxu0 0.0
  %275 = vmatpush1.msra.mxu0 0.0
  %276 = vmatprep.subr.mxu0 0.0
  %277 = vmatpush1.msra.mxu0 0.0
  %278 = vmatprep.subr.mxu0 0.0
  %279 = vmatpush1.msra.mxu0 0.0
  %280 = vmatprep.subr.mxu0 0.0
  %281 = vmatpush1.msra.mxu0 0.0
  %282 = vmatprep.subr.mxu0 0.0
  %283 = vmatpush1.msra.mxu0 0.0
  %284 = vmatprep.subr.mxu0 0.0
  %285 = vmatpush1.msra.mxu0 0.0
  %286 = vmatprep.subr.mxu0 0.0
  %287 = vmatpush1.msra.mxu0 0.0
  %288 = vmatprep.subr.mxu0 0.0
  %289 = vmatpush1.msra.mxu0 0.0
  %290 = vmatprep.subr.mxu0 0.0
  %291 = vmatpush1.msra.mxu0 0.0
  %292 = vmatprep.subr.mxu0 0.0
  %293 = vmatpush1.msra.mxu0 0.0
  %294 = vmatprep.subr.mxu0 0.0
  %295 = vmatpush1.msra.mxu0 0.0
  %296 = vmatprep.subr.mxu0 0.0
  %297 = vmatpush1.msra.mxu0 0.0
  %298 = vmatprep.subr.mxu0 0.0
  %299 = vmatpush1.msra.mxu0 0.0
  %300 = vmatprep.subr.mxu0 0.0
  %301 = vmatpush1.msra.mxu0 0.0
  %302 = vmatprep.subr.mxu0 0.0
  %303 = vmatpush1.msra.mxu0 0.0
  %304 = vmatprep.subr.mxu0 0.0
  %305 = vmatpush1.msra.mxu0 0.0
  %306 = vmatprep.subr.mxu0 0.0
  %307 = vmatpush1.msra.mxu0 0.0
  %308 = vmatprep.subr.mxu0 0.0
  %309 = vmatpush1.msra.mxu0 0.0
  %310 = vmatprep.subr.mxu0 0.0
  %311 = vmatpush1.msra.mxu0 0.0
  %312 = vmatprep.subr.mxu0 0.0
  %313 = vmatpush1.msra.mxu0 0.0
  %314 = vmatprep.subr.mxu0 0.0
  %315 = vmatpush1.msra.mxu0 0.0
  %316 = vmatprep.subr.mxu0 0.0
  %317 = vmatpush1.msra.mxu0 0.0
  %318 = vmatprep.subr.mxu0 0.0
  %319 = vmatpush1.msra.mxu0 0.0
  %320 = vmatprep.subr.mxu0 0.0
  %321 = vmatpush1.msra.mxu0 0.0
  %322 = vmatprep.subr.mxu0 0.0
  %323 = vmatpush1.msra.mxu0 0.0
  %324 = vmatprep.subr.mxu0 0.0
  %325 = vmatpush1.msra.mxu0 0.0
  %326 = vmatprep.subr.mxu0 0.0
  %327 = vmatpush1.msra.mxu0 0.0
  %328 = vmatprep.subr.mxu0 0.0
  %329 = vmatpush1.msra.mxu0 0.0
  %330 = vmatprep.mubr.f32.mxu0 0.0
  %331 = vmatmul.mubr.f32.gmra.mrb[0].mxu0 %v219
  %v332 = vpop.f32.mrb[0].mxu0
  %v333 = vadd.f32 %v215, %v332
  %v334 = vpop.f32.mrb[0].mxu0
  %335 = vmatprep.mubr.f32.mxu0 0.0
  %336 = vmatmul.mubr.f32.gmra.mrb[0].mxu0 %v222
  %v337 = vpop.f32.mrb[0].mxu0
  %v338 = vadd.f32 %v215, %v337
  %v339 = vpop.f32.mrb[0].mxu0
  %340 = vmatprep.mubr.f32.mxu0 0.0
  %341 = vmatmul.mubr.f32.gmra.mrb[0].mxu0 %v225
  %v342 = vpop.f32.mrb[0].mxu0
  %v343 = vadd.f32 %v215, %v342
  %v344 = vpop.f32.mrb[0].mxu0
  %345 = vmatprep.mubr.f32.mxu0 0.0
  %346 = vmatmul.mubr.f32.gmra.mrb[0].mxu0 %v228
  %v347 = vpop.f32.mrb[0].mxu0
  %v348 = vadd.f32 %v215, %v347
  %v349 = vpop.f32.mrb[0].mxu0
  %350 = vmatprep.mubr.f32.mxu0 0.0
  %351 = vmatmul.mubr.f32.gmra.mrb[0].mxu0 %v231
  %v352 = vpop.f32.mrb[0].mxu0
  %v353 = vadd.f32 %v215, %v352
  %v354 = vpop.f32.mrb[0].mxu0
  %355 = vmatprep.mubr.f32.mxu0 0.0
  %356 = vmatmul.mubr.f32.gmra.mrb[0].mxu0 %v234
  %v357 = vpop.f32.mrb[0].mxu0
  %v358 = vadd.f32 %v215, %v357
  %v359 = vpop.f32.mrb[0].mxu0
  %360 = vmatprep.mubr.f32.mxu0 0.0
  %361 = vmatmul.mubr.f32.gmra.mrb[0].mxu0 %v237
  %v362 = vpop.f32.mrb[0].mxu0
  %v363 = vadd.f32 %v215, %v362
  %v364 = vpop.f32.mrb[0].mxu0
  %365 = vmatprep.mubr.f32.mxu0 0.0
  %366 = vmatmul.mubr.f32.gmra.mrb[0].mxu0 %v240
  %v367 = vpop.f32.mrb[0].mxu0
  %v368 = vadd.f32 %v215, %v367
  %v369 = vpop.f32.mrb[0].mxu0
  %370 = vmatprep.mubr.f32.mxu0 0.0
  %371 = vmatmul.mubr.f32.gmra.mrb[0].mxu0 %v243
  %v372 = vpop.f32.mrb[0].mxu0
  %v373 = vadd.f32 %v215, %v372
  %v374 = vpop.f32.mrb[0].mxu0
  %375 = vmatprep.mubr.f32.mxu0 0.0
  %376 = vmatmul.mubr.f32.gmra.mrb[0].mxu0 %v246
  %v377 = vpop.f32.mrb[0].mxu0
  %v378 = vadd.f32 %v215, %v377
  %v379 = vpop.f32.mrb[0].mxu0
  %380 = vmatprep.mubr.f32.mxu0 0.0
  %381 = vmatmul.mubr.f32.gmra.mrb[0].mxu0 %v249
  %v382 = vpop.f32.mrb[0].mxu0
  %v383 = vadd.f32 %v215, %v382
  %v384 = vpop.f32.mrb[0].mxu0
  %385 = vmatprep.mubr.f32.mxu0 0.0
  %386 = vmatmul.mubr.f32.gmra.mrb[0].mxu0 %v252
  %v387 = vpop.f32.mrb[0].mxu0
  %v388 = vadd.f32 %v215, %v387
  %v389 = vpop.f32.mrb[0].mxu0
  %390 = vmatprep.mubr.f32.mxu0 0.0
  %391 = vmatmul.mubr.f32.gmra.mrb[0].mxu0 %v255
  %v392 = vpop.f32.mrb[0].mxu0
  %v393 = vadd.f32 %v215, %v392
  %v394 = vpop.f32.mrb[0].mxu0
  %395 = vmatprep.mubr.f32.mxu0 0.0
  %396 = vmatmul.mubr.f32.gmra.mrb[0].mxu0 %v258
  %v397 = vpop.f32.mrb[0].mxu0
  %v398 = vadd.f32 %v215, %v397
  %v399 = vpop.f32.mrb[0].mxu0
  %400 = vmatprep.mubr.f32.mxu0 0.0
  %401 = vmatmul.mubr.f32.gmra.mrb[0].mxu0 %v261
  %v402 = vpop.f32.mrb[0].mxu0
  %v403 = vadd.f32 %v215, %v402
  %v404 = vpop.f32.mrb[0].mxu0
  %405 = vmatprep.mubr.f32.mxu0 0.0
  %406 = vmatmul.mubr.f32.gmra.mrb[0].mxu0 %v264
  %v407 = vpop.f32.mrb[0].mxu0
  %v408 = vadd.f32 %v215, %v407
  %v409 = vpop.f32.mrb[0].mxu0
  %410 = vdwg.mxu0
  %v411 = vld [vmem:[%s4] sm:$0xff]
  %v412 = vld [vmem:[%s4 + $0x8] sm:$0xff]
  %v413 = vld [vmem:[%s4 + $0x10] sm:$0xff]
  %v414 = vld [vmem:[%s4 + $0x18] sm:$0xff]
  %v415 = vld [vmem:[%s4 + $0x20] sm:$0xff]
  %v416 = vld [vmem:[%s4 + $0x28] sm:$0xff]
  %v417 = vld [vmem:[%s4 + $0x30] sm:$0xff]
  %v418 = vld [vmem:[%s4 + $0x38] sm:$0xff]
  %v419 = vld [vmem:[%s4 + $0x40] sm:$0xff]
  %v420 = vld [vmem:[%s4 + $0x48] sm:$0xff]
  %v421 = vld [vmem:[%s4 + $0x50] sm:$0xff]
  %v422 = vld [vmem:[%s4 + $0x58] sm:$0xff]
  %v423 = vld [vmem:[%s4 + $0x60] sm:$0xff]
  %v424 = vld [vmem:[%s4 + $0x68] sm:$0xff]
  %v425 = vld [vmem:[%s4 + $0x70] sm:$0xff]
  %v426 = vld [vmem:[%s4 + $0x78] sm:$0xff]
  %v427 = vld [vmem:[%s6] sm:$0x1]
  %429 = vset.pattern.permute.xlu0 0
  %430 = vperm.xlu0 %429, %v411
  %v431 = vpop.permute.xlu0 %430
  %434 = vset.pattern.permute.xlu0 0
  %435 = vperm.xlu0 %434, %v412
  %v436 = vpop.permute.xlu0 %435
  %439 = vset.pattern.permute.xlu0 0
  %440 = vperm.xlu0 %439, %v413
  %v441 = vpop.permute.xlu0 %440
  %444 = vset.pattern.permute.xlu0 0
  %445 = vperm.xlu0 %444, %v414
  %v446 = vpop.permute.xlu0 %445
  %449 = vset.pattern.permute.xlu0 0
  %450 = vperm.xlu0 %449, %v415
  %v451 = vpop.permute.xlu0 %450
  %454 = vset.pattern.permute.xlu0 0
  %455 = vperm.xlu0 %454, %v416
  %v456 = vpop.permute.xlu0 %455
  %459 = vset.pattern.permute.xlu0 0
  %460 = vperm.xlu0 %459, %v417
  %v461 = vpop.permute.xlu0 %460
  %464 = vset.pattern.permute.xlu0 0
  %465 = vperm.xlu0 %464, %v418
  %v466 = vpop.permute.xlu0 %465
  %469 = vset.pattern.permute.xlu0 0
  %470 = vperm.xlu0 %469, %v419
  %v471 = vpop.permute.xlu0 %470
  %474 = vset.pattern.permute.xlu0 0
  %475 = vperm.xlu0 %474, %v420
  %v476 = vpop.permute.xlu0 %475
  %479 = vset.pattern.permute.xlu0 0
  %480 = vperm.xlu0 %479, %v421
  %v481 = vpop.permute.xlu0 %480
  %484 = vset.pattern.permute.xlu0 0
  %485 = vperm.xlu0 %484, %v422
  %v486 = vpop.permute.xlu0 %485
  %489 = vset.pattern.permute.xlu0 0
  %490 = vperm.xlu0 %489, %v423
  %v491 = vpop.permute.xlu0 %490
  %494 = vset.pattern.permute.xlu0 0
  %495 = vperm.xlu0 %494, %v424
  %v496 = vpop.permute.xlu0 %495
  %499 = vset.pattern.permute.xlu0 0
  %500 = vperm.xlu0 %499, %v425
  %v501 = vpop.permute.xlu0 %500
  %504 = vset.pattern.permute.xlu0 0
  %505 = vperm.xlu0 %504, %v426
  %v506 = vpop.permute.xlu0 %505
  %v509 = vlaneseq
  %v510 = vshrl.u32 %v509, 7
  %v511 = vsub.s32 0, %v510
  %v512 = vrot.slane %v427, %v511
  %v514 = vmul.f32 %v431, %v512
  %v515 = vmul.f32 %v436, %v512
  %v516 = vmul.f32 %v441, %v512
  %v517 = vmul.f32 %v446, %v512
  %v518 = vmul.f32 %v451, %v512
  %v519 = vmul.f32 %v456, %v512
  %v520 = vmul.f32 %v461, %v512
  %v521 = vmul.f32 %v466, %v512
  %v522 = vmul.f32 %v471, %v512
  %v523 = vmul.f32 %v476, %v512
  %v524 = vmul.f32 %v481, %v512
  %v525 = vmul.f32 %v486, %v512
  %v526 = vmul.f32 %v491, %v512
  %v527 = vmul.f32 %v496, %v512
  %v528 = vmul.f32 %v501, %v512
  %v529 = vmul.f32 %v506, %v512
  %v530 = vld [vmem:[%s5] sm:$0xff]
  %v531 = vld [vmem:[%s5 + $0x8] sm:$0xff]
  %v532 = vld [vmem:[%s5 + $0x10] sm:$0xff]
  %v533 = vld [vmem:[%s5 + $0x18] sm:$0xff]
  %v534 = vld [vmem:[%s5 + $0x20] sm:$0xff]
  %v535 = vld [vmem:[%s5 + $0x28] sm:$0xff]
  %v536 = vld [vmem:[%s5 + $0x30] sm:$0xff]
  %v537 = vld [vmem:[%s5 + $0x38] sm:$0xff]
  %v538 = vld [vmem:[%s5 + $0x40] sm:$0xff]
  %v539 = vld [vmem:[%s5 + $0x48] sm:$0xff]
  %v540 = vld [vmem:[%s5 + $0x50] sm:$0xff]
  %v541 = vld [vmem:[%s5 + $0x58] sm:$0xff]
  %v542 = vld [vmem:[%s5 + $0x60] sm:$0xff]
  %v543 = vld [vmem:[%s5 + $0x68] sm:$0xff]
  %v544 = vld [vmem:[%s5 + $0x70] sm:$0xff]
  %v545 = vld [vmem:[%s5 + $0x78] sm:$0xff]
  %v546 = vld [vmem:[%s7] sm:$0x1]
  %548 = vset.pattern.permute.xlu0 0
  %549 = vperm.xlu0 %548, %v530
  %v550 = vpop.permute.xlu0 %549
  %553 = vset.pattern.permute.xlu0 0
  %554 = vperm.xlu0 %553, %v531
  %v555 = vpop.permute.xlu0 %554
  %558 = vset.pattern.permute.xlu0 0
  %559 = vperm.xlu0 %558, %v532
  %v560 = vpop.permute.xlu0 %559
  %563 = vset.pattern.permute.xlu0 0
  %564 = vperm.xlu0 %563, %v533
  %v565 = vpop.permute.xlu0 %564
  %568 = vset.pattern.permute.xlu0 0
  %569 = vperm.xlu0 %568, %v534
  %v570 = vpop.permute.xlu0 %569
  %573 = vset.pattern.permute.xlu0 0
  %574 = vperm.xlu0 %573, %v535
  %v575 = vpop.permute.xlu0 %574
  %578 = vset.pattern.permute.xlu0 0
  %579 = vperm.xlu0 %578, %v536
  %v580 = vpop.permute.xlu0 %579
  %583 = vset.pattern.permute.xlu0 0
  %584 = vperm.xlu0 %583, %v537
  %v585 = vpop.permute.xlu0 %584
  %588 = vset.pattern.permute.xlu0 0
  %589 = vperm.xlu0 %588, %v538
  %v590 = vpop.permute.xlu0 %589
  %593 = vset.pattern.permute.xlu0 0
  %594 = vperm.xlu0 %593, %v539
  %v595 = vpop.permute.xlu0 %594
  %598 = vset.pattern.permute.xlu0 0
  %599 = vperm.xlu0 %598, %v540
  %v600 = vpop.permute.xlu0 %599
  %603 = vset.pattern.permute.xlu0 0
  %604 = vperm.xlu0 %603, %v541
  %v605 = vpop.permute.xlu0 %604
  %608 = vset.pattern.permute.xlu0 0
  %609 = vperm.xlu0 %608, %v542
  %v610 = vpop.permute.xlu0 %609
  %613 = vset.pattern.permute.xlu0 0
  %614 = vperm.xlu0 %613, %v543
  %v615 = vpop.permute.xlu0 %614
  %618 = vset.pattern.permute.xlu0 0
  %619 = vperm.xlu0 %618, %v544
  %v620 = vpop.permute.xlu0 %619
  %623 = vset.pattern.permute.xlu0 0
  %624 = vperm.xlu0 %623, %v545
  %v625 = vpop.permute.xlu0 %624
  %v628 = vlaneseq
  %v629 = vshrl.u32 %v628, 7
  %v630 = vsub.s32 0, %v629
  %v631 = vrot.slane %v546, %v630
  %v633 = vmul.f32 %v550, %v631
  %v634 = vmul.f32 %v555, %v631
  %v635 = vmul.f32 %v560, %v631
  %v636 = vmul.f32 %v565, %v631
  %v637 = vmul.f32 %v570, %v631
  %v638 = vmul.f32 %v575, %v631
  %v639 = vmul.f32 %v580, %v631
  %v640 = vmul.f32 %v585, %v631
  %v641 = vmul.f32 %v590, %v631
  %v642 = vmul.f32 %v595, %v631
  %v643 = vmul.f32 %v600, %v631
  %v644 = vmul.f32 %v605, %v631
  %v645 = vmul.f32 %v610, %v631
  %v646 = vmul.f32 %v615, %v631
  %v647 = vmul.f32 %v620, %v631
  %v648 = vmul.f32 %v625, %v631
  %v649 = vadd.f32 %v514, %v633
  %v650 = vadd.f32 %v515, %v634
  %v651 = vadd.f32 %v516, %v635
  %v652 = vadd.f32 %v517, %v636
  %v653 = vadd.f32 %v518, %v637
  %v654 = vadd.f32 %v519, %v638
  %v655 = vadd.f32 %v520, %v639
  %v656 = vadd.f32 %v521, %v640
  %v657 = vadd.f32 %v522, %v641
  %v658 = vadd.f32 %v523, %v642
  %v659 = vadd.f32 %v524, %v643
  %v660 = vadd.f32 %v525, %v644
  %v661 = vadd.f32 %v526, %v645
  %v662 = vadd.f32 %v527, %v646
  %v663 = vadd.f32 %v528, %v647
  %v664 = vadd.f32 %v529, %v648
  %v665 = vmul.f32 %v649, 0.5
  %v666 = vmul.f32 %v650, 0.5
  %v667 = vmul.f32 %v651, 0.5
  %v668 = vmul.f32 %v652, 0.5
  %v669 = vmul.f32 %v653, 0.5
  %v670 = vmul.f32 %v654, 0.5
  %v671 = vmul.f32 %v655, 0.5
  %v672 = vmul.f32 %v656, 0.5
  %v673 = vmul.f32 %v657, 0.5
  %v674 = vmul.f32 %v658, 0.5
  %v675 = vmul.f32 %v659, 0.5
  %v676 = vmul.f32 %v660, 0.5
  %v677 = vmul.f32 %v661, 0.5
  %v678 = vmul.f32 %v662, 0.5
  %v679 = vmul.f32 %v663, 0.5
  %v680 = vmul.f32 %v664, 0.5
  %v681 = vadd.f32 %v333, %v665
  %v682 = vadd.f32 %v338, %v666
  %v683 = vadd.f32 %v343, %v667
  %v684 = vadd.f32 %v348, %v668
  %v685 = vadd.f32 %v353, %v669
  %v686 = vadd.f32 %v358, %v670
  %v687 = vadd.f32 %v363, %v671
  %v688 = vadd.f32 %v368, %v672
  %v689 = vadd.f32 %v373, %v673
  %v690 = vadd.f32 %v378, %v674
  %v691 = vadd.f32 %v383, %v675
  %v692 = vadd.f32 %v388, %v676
  %v693 = vadd.f32 %v393, %v677
  %v694 = vadd.f32 %v398, %v678
  %v695 = vadd.f32 %v403, %v679
  %v696 = vadd.f32 %v408, %v680
  %v697 = vxor.u32 %v681, 2147483648
  %v698 = vxor.u32 %v682, 2147483648
  %v699 = vxor.u32 %v683, 2147483648
  %v700 = vxor.u32 %v684, 2147483648
  %v701 = vxor.u32 %v685, 2147483648
  %v702 = vxor.u32 %v686, 2147483648
  %v703 = vxor.u32 %v687, 2147483648
  %v704 = vxor.u32 %v688, 2147483648
  %v705 = vxor.u32 %v689, 2147483648
  %v706 = vxor.u32 %v690, 2147483648
  %v707 = vxor.u32 %v691, 2147483648
  %v708 = vxor.u32 %v692, 2147483648
  %v709 = vxor.u32 %v693, 2147483648
  %v710 = vxor.u32 %v694, 2147483648
  %v711 = vxor.u32 %v695, 2147483648
  %v712 = vxor.u32 %v696, 2147483648
  %v713 = vmul.f32 %v697, 1.442695
  %v714 = vpow.pop %v713
  %v715 = vmul.f32 %v698, 1.442695
  %v716 = vpow.pop %v715
  %v717 = vmul.f32 %v699, 1.442695
  %v718 = vpow.pop %v717
  %v719 = vmul.f32 %v700, 1.442695
  %v720 = vpow.pop %v719
  %v721 = vmul.f32 %v701, 1.442695
  %v722 = vpow.pop %v721
  %v723 = vmul.f32 %v702, 1.442695
  %v724 = vpow.pop %v723
  %v725 = vmul.f32 %v703, 1.442695
  %v726 = vpow.pop %v725
  %v727 = vmul.f32 %v704, 1.442695
  %v728 = vpow.pop %v727
  %v729 = vmul.f32 %v705, 1.442695
  %v730 = vpow.pop %v729
  %v731 = vmul.f32 %v706, 1.442695
  %v732 = vpow.pop %v731
  %v733 = vmul.f32 %v707, 1.442695
  %v734 = vpow.pop %v733
  %v735 = vmul.f32 %v708, 1.442695
  %v736 = vpow.pop %v735
  %v737 = vmul.f32 %v709, 1.442695
  %v738 = vpow.pop %v737
  %v739 = vmul.f32 %v710, 1.442695
  %v740 = vpow.pop %v739
  %v741 = vmul.f32 %v711, 1.442695
  %v742 = vpow.pop %v741
  %v743 = vmul.f32 %v712, 1.442695
  %v744 = vpow.pop %v743
  %v745 = vadd.f32 %v714, 1.0
  %v746 = vadd.f32 %v716, 1.0
  %v747 = vadd.f32 %v718, 1.0
  %v748 = vadd.f32 %v720, 1.0
  %v749 = vadd.f32 %v722, 1.0
  %v750 = vadd.f32 %v724, 1.0
  %v751 = vadd.f32 %v726, 1.0
  %v752 = vadd.f32 %v728, 1.0
  %v753 = vadd.f32 %v730, 1.0
  %v754 = vadd.f32 %v732, 1.0
  %v755 = vadd.f32 %v734, 1.0
  %v756 = vadd.f32 %v736, 1.0
  %v757 = vadd.f32 %v738, 1.0
  %v758 = vadd.f32 %v740, 1.0
  %v759 = vadd.f32 %v742, 1.0
  %v760 = vadd.f32 %v744, 1.0
  %v761 = vrcp.pop %v745
  %v762 = vmul.f32 1.0, %v761
  %v763 = vrcp.pop %v746
  %v764 = vmul.f32 1.0, %v763
  %v765 = vrcp.pop %v747
  %v766 = vmul.f32 1.0, %v765
  %v767 = vrcp.pop %v748
  %v768 = vmul.f32 1.0, %v767
  %v769 = vrcp.pop %v749
  %v770 = vmul.f32 1.0, %v769
  %v771 = vrcp.pop %v750
  %v772 = vmul.f32 1.0, %v771
  %v773 = vrcp.pop %v751
  %v774 = vmul.f32 1.0, %v773
  %v775 = vrcp.pop %v752
  %v776 = vmul.f32 1.0, %v775
  %v777 = vrcp.pop %v753
  %v778 = vmul.f32 1.0, %v777
  %v779 = vrcp.pop %v754
  %v780 = vmul.f32 1.0, %v779
  %v781 = vrcp.pop %v755
  %v782 = vmul.f32 1.0, %v781
  %v783 = vrcp.pop %v756
  %v784 = vmul.f32 1.0, %v783
  %v785 = vrcp.pop %v757
  %v786 = vmul.f32 1.0, %v785
  %v787 = vrcp.pop %v758
  %v788 = vmul.f32 1.0, %v787
  %v789 = vrcp.pop %v759
  %v790 = vmul.f32 1.0, %v789
  %v791 = vrcp.pop %v760
  %v792 = vmul.f32 1.0, %v791
  %793 = vst [vmem:[%s8] sm:$0xff] %v762
  %794 = vst [vmem:[%s8 + $0x8] sm:$0xff] %v764
  %795 = vst [vmem:[%s8 + $0x10] sm:$0xff] %v766
  %796 = vst [vmem:[%s8 + $0x18] sm:$0xff] %v768
  %797 = vst [vmem:[%s8 + $0x20] sm:$0xff] %v770
  %798 = vst [vmem:[%s8 + $0x28] sm:$0xff] %v772
  %799 = vst [vmem:[%s8 + $0x30] sm:$0xff] %v774
  %800 = vst [vmem:[%s8 + $0x38] sm:$0xff] %v776
  %801 = vst [vmem:[%s8 + $0x40] sm:$0xff] %v778
  %802 = vst [vmem:[%s8 + $0x48] sm:$0xff] %v780
  %803 = vst [vmem:[%s8 + $0x50] sm:$0xff] %v782
  %804 = vst [vmem:[%s8 + $0x58] sm:$0xff] %v784
  %805 = vst [vmem:[%s8 + $0x60] sm:$0xff] %v786
  %806 = vst [vmem:[%s8 + $0x68] sm:$0xff] %v788
  %807 = vst [vmem:[%s8 + $0x70] sm:$0xff] %v790
  %808 = vst [vmem:[%s8 + $0x78] sm:$0xff] %v792
  // Predicated region
  $region34: #{cfgt_forward.3} parent=0 // pred_check
    _
  $region35: #{cfgt_forward.3} parent=0 // pred_check_branch
    %810 = sbr.rel (0) target = $region37
  $region36: #{cfgt_forward.3} parent=0 // pred_region
    _
  $region37: #{cfgt_forward.3} parent=0 // pred_fallthru
    _
  // Predicated region
  $region38: #{cfgt_forward.3} parent=0 // pred_check
    _
  $region39: #{cfgt_forward.3} parent=0 // pred_check_branch
    %812 = sbr.rel (0) target = $region41
  $region40: #{cfgt_forward.3} parent=0 // pred_region
    _
  $region41: #{cfgt_forward.3} parent=0 // pred_fallthru
    _

</llo_original>
